<compile_context>
chip_gen: v7x
topology: tpu7x:2x2x1
jax: 0.10.0
libtpu: 0.0.40
codegen_flags: <defaults>
</compile_context>

<pallas_src>
import functools

import jax
import jax.numpy as jnp
from jax.experimental import pallas as pl
from jax.experimental.pallas import tpu as pltpu


_VMEM_LIMIT_BYTES = 48 * 1024 * 1024   # explicit scoped VMEM limit (safe on v5e/v6e/v7x)
_VMEM_TILE_BUDGET = 32 * 1024 * 1024   # budget used to size tile_n


def _pick_tile_n(n, d, vmem_budget_bytes=_VMEM_TILE_BUDGET):
    """Largest power-of-two tile (multiple of 8) that divides n and fits VMEM."""
    # Resident bytes: F in f32 + bf16 (double-buffered by the pipeline even for
    # a constant block index) + the (d, d)/(1, 1) outputs.
    resident = 2 * n * d * (4 + 2) + d * d * 4 + 64
    for cand in (1024, 512, 256, 128, 64, 32, 16, 8):
        if cand > n or n % cand:
            continue
        # bf16 L slab (double-buffered) + (tile_n, d) f32 accumulator scratch.
        use = resident + 2 * cand * n * 2 + cand * d * 4
        if use <= vmem_budget_bytes:
            return cand
    # Fallback: whole problem in one grid step (block dims equal to the full
    # array dims always satisfy the (8, 128) rule, even if n % 8 != 0).
    # TODO(synk): for very large N (resident F / (N, N) streaming no longer fit
    # VMEM) add a second grid axis over the Laplacian columns (K tiling).
    return n


def _gmrf_kernel(f32_ref, fbf_ref, l_rows_ref, g_ref, l2_ref, acc_ref, *, tile_n):
    i = pl.program_id(0)

    @pl.when(i == 0)
    def _init():
        acc_ref[...] = jnp.zeros_like(acc_ref)
        # One-shot Gram F^T F in f32: contract the node (row) axis directly so
        # no explicit XLU transpose is needed before the MXU push.
        g_ref[...] = jax.lax.dot_general(
            f32_ref[...], f32_ref[...],
            dimension_numbers=(((0,), (0,)), ((), ())),
            preferred_element_type=jnp.float32)

    # Row slab of (L @ F) on the MXU: bf16 inputs, f32 accumulation.
    lf = jnp.dot(l_rows_ref[...], fbf_ref[...],
                 preferred_element_type=jnp.float32)            # (TN, D) f32

    # f32 tile of F via a ref slice -> only TN*D elements loaded this step.
    start = pl.multiple_of(i * tile_n, tile_n)
    f_tile = f32_ref[pl.ds(start, tile_n), :]                   # (TN, D) f32

    # Lane/sublane-parallel partial sums: pure VPU adds, hide under the MXU.
    acc_ref[...] += f_tile * lf

    @pl.when(i == pl.num_programs(0) - 1)
    def _finalize():
        # Single cross-lane/sublane reduce + single store to the (1, 1) output.
        l2_ref[...] = jnp.sum(acc_ref[...], keepdims=True)


def gmrf_loss_pallas(features, laplacian, beta=1.0, tile_n=None):
    """features: (N, D), laplacian: (N, N) -> scalar loss (f32)."""
    n, d = features.shape
    assert laplacian.shape == (n, n)

    if tile_n is None:
        tile_n = _pick_tile_n(n, d)
    else:
        assert n % tile_n == 0, "tile_n must divide N"
        assert tile_n % 8 == 0 or tile_n == n, "tile_n must be a multiple of 8"

    f32 = features.astype(jnp.float32)
    fbf = features.astype(jnp.bfloat16)   # bf16 copy for the MXU matmul
    lbf = laplacian.astype(jnp.bfloat16)  # halves the dominant N^2 HBM stream
    # TODO(synk): if the real Laplacian is sparse (edge_index), a scalar-prefetch
    # variant gathering only nonzero row blocks changes the asymptotics.

    num_tiles = n // tile_n
    flops = 2 * n * n * d + 2 * n * d * d
    bytes_accessed = 2 * n * n + (4 + 2) * n * d + 4 * (d * d + 1)

    kernel = functools.partial(_gmrf_kernel, tile_n=tile_n)

    gram, l2 = pl.pallas_call(
        kernel,
        grid=(num_tiles,),
        in_specs=[
            pl.BlockSpec((n, d), lambda i: (0, 0)),        # F (f32), resident
            pl.BlockSpec((n, d), lambda i: (0, 0)),        # F (bf16), resident
            pl.BlockSpec((tile_n, n), lambda i: (i, 0)),   # L row slab, streamed
        ],
        out_specs=(
            pl.BlockSpec((d, d), lambda i: (0, 0)),        # Gram F^T F
            pl.BlockSpec((1, 1), lambda i: (0, 0)),        # l2 scalar
        ),
        out_shape=(
            jax.ShapeDtypeStruct((d, d), jnp.float32),
            jax.ShapeDtypeStruct((1, 1), jnp.float32),
        ),
        scratch_shapes=[pltpu.VMEM((tile_n, d), jnp.float32)],
        compiler_params=pltpu.CompilerParams(
            dimension_semantics=("arbitrary",),
            vmem_limit_bytes=_VMEM_LIMIT_BYTES),
        cost_estimate=pl.CostEstimate(
            flops=flops, transcendentals=0, bytes_accessed=bytes_accessed),
    )(f32, fbf, lbf)

    # Small D x D logdet in the JAX glue; beta scaling and +I_D folded in here.
    # TODO(synk): logdet (Cholesky/LU) has no clean Pallas primitive; kept in JAX.
    l1 = jnp.linalg.slogdet(jnp.eye(d, dtype=jnp.float32) + gram / beta)[1]
    return (l2[0, 0] - l1 / 2.0) / n


def gmrf_loss_ref(features, laplacian, beta=1.0):
    """Pure-JAX reference mirroring the PyTorch module."""
    n, d = features.shape
    eye = jnp.eye(d, dtype=features.dtype)
    l1 = jnp.linalg.slogdet(eye + features.T @ features / beta)[1]
    l2 = jnp.sum(features * (laplacian @ features))
    return (l2 - l1 / 2.0) / n


if __name__ == "__main__":
    key = jax.random.PRNGKey(0)
    N, D = 16, 8  # num_nodes, hidden_dim

    kf, _ = jax.random.split(key)
    features = jax.random.normal(kf, (N, D), dtype=jnp.float32) * 0.5

    # Deterministic ring-graph Laplacian L = Deg - Adj (stands in for edge_index).
    idx = jnp.arange(N)
    adj = (jnp.zeros((N, N), jnp.float32)
           .at[idx, (idx + 1) % N].set(1.0)
           .at[idx, (idx - 1) % N].set(1.0))
    laplacian = jnp.diag(adj.sum(axis=1)) - adj

    loss = gmrf_loss_pallas(features, laplacian, beta=1.0)
    loss = jax.block_until_ready(loss)

    ref = gmrf_loss_ref(features, laplacian, beta=1.0)
    # bf16 MXU inputs for the L @ F matmul -> slightly relaxed tolerance.
    assert jnp.allclose(loss, ref, rtol=2e-2, atol=2e-2), (loss, ref)

    print("KERNEL_OK")
</pallas_src>

<mosaic_0001>
module attributes {stable_mosaic.version = 11 : i64} {
  func.func @_gmrf_kernel(%arg0: i32, %arg1: memref<16x8xf32, #tpu.memory_space<vmem>>, %arg2: memref<16x8xbf16, #tpu.memory_space<vmem>>, %arg3: memref<16x16xbf16, #tpu.memory_space<vmem>>, %arg4: memref<8x8xf32, #tpu.memory_space<vmem>>, %arg5: memref<1x1xf32, #tpu.memory_space<vmem>>, %arg6: memref<16x8xf32, #tpu.memory_space<vmem>>) attributes {dimension_semantics = [#tpu.dimension_semantics<arbitrary>], iteration_bounds = array<i64: 1>, scalar_prefetch = 0 : i64, scratch_operands = 1 : i64, tpu.core_type = #tpu.core_type<tc>, window_params = [{pipeline_mode = #tpu.pipeline_mode<synchronous>, transform_indices = @transform_0, window_bounds = array<i64: 16, 8>}, {pipeline_mode = #tpu.pipeline_mode<synchronous>, transform_indices = @transform_1, window_bounds = array<i64: 16, 8>}, {transform_indices = @transform_2, window_bounds = array<i64: 16, 16>}, {pipeline_mode = #tpu.pipeline_mode<synchronous>, transform_indices = @transform_3, window_bounds = array<i64: 8, 8>}, {pipeline_mode = #tpu.pipeline_mode<synchronous>, transform_indices = @transform_4, window_bounds = array<i64: 1, 1>}]} {
    %c0_i32 = arith.constant 0 : i32
    %0 = arith.cmpi eq, %arg0, %c0_i32 : i32
    %1 = arith.extui %0 : i1 to i32
    %c0_i32_0 = arith.constant 0 : i32
    %2 = arith.cmpi ne, %1, %c0_i32_0 : i32
    scf.if %2 {
      %cst_11 = arith.constant 0.000000e+00 : f32
      %17 = vector.broadcast %cst_11 : f32 to vector<16x8xf32>
      %c0_12 = arith.constant 0 : index
      %c0_13 = arith.constant 0 : index
      %18 = vector.load %arg6[%c0_12, %c0_13] : memref<16x8xf32, #tpu.memory_space<vmem>>, vector<16x8xf32>
      tpu.vector_store %arg6[%c0_12, %c0_13], %17 {strides = array<i32>} : memref<16x8xf32, #tpu.memory_space<vmem>>, vector<16x8xf32>,
      %c0_14 = arith.constant 0 : index
      %c0_15 = arith.constant 0 : index
      %19 = vector.load %arg1[%c0_14, %c0_15] : memref<16x8xf32, #tpu.memory_space<vmem>>, vector<16x8xf32>
      %c0_16 = arith.constant 0 : index
      %c0_17 = arith.constant 0 : index
      %20 = vector.load %arg1[%c0_16, %c0_17] : memref<16x8xf32, #tpu.memory_space<vmem>>, vector<16x8xf32>
      %cst_18 = arith.constant dense<0.000000e+00> : vector<8x8xf32>
      %21 = tpu.matmul %19, %20, %cst_18 {dimension_numbers = #tpu.dot_dimension_numbers<[0], [0], [1], [1], [0, 1, 1, 1], [], []>} : vector<16x8xf32>, vector<16x8xf32>, vector<8x8xf32> -> vector<8x8xf32>
      %c0_19 = arith.constant 0 : index
      %c0_20 = arith.constant 0 : index
      %22 = vector.load %arg4[%c0_19, %c0_20] : memref<8x8xf32, #tpu.memory_space<vmem>>, vector<8x8xf32>
      tpu.vector_store %arg4[%c0_19, %c0_20], %21 {strides = array<i32>} : memref<8x8xf32, #tpu.memory_space<vmem>>, vector<8x8xf32>,
    } else {
    }
    %c0 = arith.constant 0 : index
    %c0_1 = arith.constant 0 : index
    %3 = vector.load %arg3[%c0, %c0_1] : memref<16x16xbf16, #tpu.memory_space<vmem>>, vector<16x16xbf16>
    %c0_2 = arith.constant 0 : index
    %c0_3 = arith.constant 0 : index
    %4 = vector.load %arg2[%c0_2, %c0_3] : memref<16x8xbf16, #tpu.memory_space<vmem>>, vector<16x8xbf16>
    %cst = arith.constant dense<0.000000e+00> : vector<16x8xf32>
    %5 = tpu.matmul %3, %4, %cst {dimension_numbers = #tpu.dot_dimension_numbers<[1], [0], [0], [1], [0, 0, 1, 1], [], []>} : vector<16x16xbf16>, vector<16x8xbf16>, vector<16x8xf32> -> vector<16x8xf32>
    %c16_i32 = arith.constant 16 : i32
    %6 = arith.muli %arg0, %c16_i32 : i32
    %7 = tpu.assume_multiple %6, 16 : i32
    %8 = arith.index_cast %7 : i32 to index
    %c0_4 = arith.constant 0 : index
    %9 = vector.load %arg1[%8, %c0_4] : memref<16x8xf32, #tpu.memory_space<vmem>>, vector<16x8xf32>
    %c0_5 = arith.constant 0 : index
    %c0_6 = arith.constant 0 : index
    %10 = vector.load %arg6[%c0_5, %c0_6] : memref<16x8xf32, #tpu.memory_space<vmem>>, vector<16x8xf32>
    %11 = arith.mulf %9, %5 : vector<16x8xf32>
    %12 = arith.addf %10, %11 : vector<16x8xf32>
    %c0_7 = arith.constant 0 : index
    %c0_8 = arith.constant 0 : index
    %13 = vector.load %arg6[%c0_7, %c0_8] : memref<16x8xf32, #tpu.memory_space<vmem>>, vector<16x8xf32>
    tpu.vector_store %arg6[%c0_7, %c0_8], %12 {strides = array<i32>} : memref<16x8xf32, #tpu.memory_space<vmem>>, vector<16x8xf32>,
    %c0_i32_9 = arith.constant 0 : i32
    %14 = arith.cmpi eq, %arg0, %c0_i32_9 : i32
    %15 = arith.extui %14 : i1 to i32
    %c0_i32_10 = arith.constant 0 : i32
    %16 = arith.cmpi ne, %15, %c0_i32_10 : i32
    scf.if %16 {
      %c0_11 = arith.constant 0 : index
      %c0_12 = arith.constant 0 : index
      %17 = vector.load %arg6[%c0_11, %c0_12] : memref<16x8xf32, #tpu.memory_space<vmem>>, vector<16x8xf32>
      %18 = vector.shape_cast %17 : vector<16x8xf32> to vector<1x16x8xf32>
      %cst_13 = arith.constant dense<0.000000e+00> : vector<1xf32>
      %19 = vector.multi_reduction <add>, %18, %cst_13 [1, 2] : vector<1x16x8xf32> to vector<1xf32>
      %20 = vector.shape_cast %19 : vector<1xf32> to vector<1x1x1xf32>
      %21 = vector.extract %20[0, 0, 0] : f32 from vector<1x1x1xf32>
      %22 = vector.broadcast %21 : f32 to vector<1x1xf32>
      %c0_14 = arith.constant 0 : index
      %c0_15 = arith.constant 0 : index
      %23 = vector.load %arg5[%c0_14, %c0_15] : memref<1x1xf32, #tpu.memory_space<vmem>>, vector<1x1xf32>
      tpu.vector_store %arg5[%c0_14, %c0_15], %22 {strides = array<i32>} : memref<1x1xf32, #tpu.memory_space<vmem>>, vector<1x1xf32>,
    } else {
    }
    return
  }
  func.func @transform_0(%arg0: i32) -> (i32, i32) {
    %c0_i32 = arith.constant 0 : i32
    %c0_i32_0 = arith.constant 0 : i32
    %c0_i32_1 = arith.constant 0 : i32
    return %c0_i32, %c0_i32_0 : i32, i32
  }
  func.func @transform_1(%arg0: i32) -> (i32, i32) {
    %c0_i32 = arith.constant 0 : i32
    %c0_i32_0 = arith.constant 0 : i32
    %c0_i32_1 = arith.constant 0 : i32
    return %c0_i32, %c0_i32_0 : i32, i32
  }
  func.func @transform_2(%arg0: i32) -> (i32, i32) {
    %c0_i32 = arith.constant 0 : i32
    %c0_i32_0 = arith.constant 0 : i32
    return %arg0, %c0_i32 : i32, i32
  }
  func.func @transform_3(%arg0: i32) -> (i32, i32) {
    %c0_i32 = arith.constant 0 : i32
    %c0_i32_0 = arith.constant 0 : i32
    %c0_i32_1 = arith.constant 0 : i32
    return %c0_i32, %c0_i32_0 : i32, i32
  }
  func.func @transform_4(%arg0: i32) -> (i32, i32) {
    %c0_i32 = arith.constant 0 : i32
    %c0_i32_0 = arith.constant 0 : i32
    %c0_i32_1 = arith.constant 0 : i32
    return %c0_i32, %c0_i32_0 : i32, i32
  }
}

</mosaic_0001>

<llo_original>
// kernel: tpu_custom_call.1
$region0: #{tpu_custom_call.1}
  #allocation0 [shape = 'u32[]', space=smem, size = 0x4, offset = 0x4, fixed_abs, tag = 'smem constant byte address 0x4 - core index']
  #allocation1 [shape = 'u32[144,128]{1,0:T(1,128)}', space=vmem, size = 0x12000, scoped, tag = 'internal scratch']
  #allocation2 [shape = 'f32[16,8]{1,0:T(8,128)}', space=vmem, size = 0x2000, scoped, tag = 'scratch operand']
  %s0 = inlined_call_operand.vmem [shape: f32[16,8], index: 0, kind: input, shape index: {}]
  %s1 = inlined_call_operand.vmem [shape: bf16[16,8], index: 1, kind: input, shape index: {}]
  %s2 = inlined_call_operand.vmem [shape: bf16[16,16], index: 2, kind: input, shape index: {}]
  %s3 = inlined_call_operand.hbm [shape: f32[8,8], index: 3, kind: output, shape index: {0}]
  %s4 = inlined_call_operand.hbm [shape: f32[1,1], index: 4, kind: output, shape index: {1}]
  %5 = xla_tuple %s3, %s4
  %s6 = sld [smem:[#allocation0]]
  $region38: #{tpu_custom_call.1} parent=0
    _
  %s8 = ssub.s32 1, %s6
  %s9 = scalar_select 0, %s8, %s6
  $region1: #{tpu_custom_call.1} parent=0
    #allocation3 [shape = 'u8[4096]{0}', space=vmem, size = 0x1000, scoped, tag = 'output window, operand 0, single buffered']
    #allocation4 [shape = 's32[1]{0}', space=sflag, size = 0x4, scoped, tag = 'scoped memory for tpu_custom_call.1']
    #allocation5 [shape = 'u8[512]{0}', space=vmem, size = 0x400, scoped, tag = 'output window, operand 1, single buffered']
    #allocation6 [shape = 's32[1]{0}', space=sflag, size = 0x4, scoped, tag = 'scoped memory for tpu_custom_call.1']
    %10 = vsyncpa [#allocation4], 0
    %11 = vsyncpa [#allocation6], 0
    // Predicated region
    $region2: #{tpu_custom_call.1} parent=1 // pred_check
      _
    $region3: #{tpu_custom_call.1} parent=1 // pred_check_branch
      %13 = sbr.rel (0) target = $region5
    $region4: #{tpu_custom_call.1} parent=1 // pred_region
      _
    $region5: #{tpu_custom_call.1} parent=1 // pred_fallthru
      _
    // Predicated region
    $region6: #{tpu_custom_call.1} parent=1 // pred_check
      _
    $region7: #{tpu_custom_call.1} parent=1 // pred_check_branch
      %15 = sbr.rel (0) target = $region9
    $region8: #{tpu_custom_call.1} parent=1 // pred_region
      _
    $region9: #{tpu_custom_call.1} parent=1 // pred_fallthru
      _
    // Predicated region
    $region10: #{tpu_custom_call.1} parent=1 // pred_check
      _
    $region11: #{tpu_custom_call.1} parent=1 // pred_check_branch
      %17 = sbr.rel (0) target = $region13
    $region12: #{tpu_custom_call.1} parent=1 // pred_region
      _
    $region13: #{tpu_custom_call.1} parent=1 // pred_fallthru
      _
    %p19 = scmp.eq.s32.totalorder 0, 0
    // Predicated region
    $region14: #{tpu_custom_call.1} parent=1 // pred_check
      %p20 = pneg %p19
    $region15: #{tpu_custom_call.1} parent=1 // pred_check_branch
      %22 = sbr.rel (%p20) target = $region17
    $region16: #{tpu_custom_call.1} parent=1 // pred_region
      %vm23 = vcmask 64512
      %24 = vst.msk [vmem:[#allocation2] sm:$0xff] %vm23, 0.0
      %25 = vst.msk [vmem:[#allocation2 + $0x8] sm:$0xff] %vm23, 0.0
      %v26 = vld [vmem:[%s0] sm:$0xff]
      %v27 = vld [vmem:[%s0 + $0x8] sm:$0xff]
      %28 = vxpose.xlu0.b32.start [1/16] %v26, 128
      %29 = vxpose.xlu0.b32.cont [2/16] %v27, 128
      %30 = vxpose.xlu0.b32.cont [3/16] 0.0, 128
      %31 = vxpose.xlu0.b32.cont [4/16] 0.0, 128
      %32 = vxpose.xlu0.b32.cont [5/16] 0.0, 128
      %33 = vxpose.xlu0.b32.cont [6/16] 0.0, 128
      %34 = vxpose.xlu0.b32.cont [7/16] 0.0, 128
      %35 = vxpose.xlu0.b32.cont [8/16] 0.0, 128
      %36 = vxpose.xlu0.b32.cont [9/16] 0.0, 128
      %37 = vxpose.xlu0.b32.cont [10/16] 0.0, 128
      %38 = vxpose.xlu0.b32.cont [11/16] 0.0, 128
      %39 = vxpose.xlu0.b32.cont [12/16] 0.0, 128
      %40 = vxpose.xlu0.b32.cont [13/16] 0.0, 128
      %41 = vxpose.xlu0.b32.cont [14/16] 0.0, 128
      %42 = vxpose.xlu0.b32.cont [15/16] 0.0, 128
      %43 = vxpose.xlu0.b32.end [16/16] 0.0, 128
      %v44 = vpop.trf.xlu0
      %v45 = vpop.trf.xlu0
      %v46 = vpop.trf.xlu0
      %v47 = vpop.trf.xlu0
      %v48 = vpop.trf.xlu0
      %v49 = vpop.trf.xlu0
      %v50 = vpop.trf.xlu0
      %v51 = vpop.trf.xlu0
      %v52 = vpop.trf.xlu0
      %v53 = vpop.trf.xlu0
      %v54 = vpop.trf.xlu0
      %v55 = vpop.trf.xlu0
      %v56 = vpop.trf.xlu0
      %v57 = vpop.trf.xlu0
      %v58 = vpop.trf.xlu0
      %v59 = vpop.trf.xlu0
      %vm60 = vcmask 130048
      %v62 = vsel %vm60, %v44, 0
      %64 = vmatprep.subr.mxu0 0.0
      %65 = vmatpush1.msra.mxu0 %v26
      %66 = vmatprep.subr.mxu0 0.0
      %67 = vmatpush1.msra.mxu0 %v27
      %68 = vmatprep.subr.mxu0 0.0
      %69 = vmatpush1.msra.mxu0 0.0
      %70 = vmatprep.subr.mxu0 0.0
      %71 = vmatpush1.msra.mxu0 0.0
      %72 = vmatprep.subr.mxu0 0.0
      %73 = vmatpush1.msra.mxu0 0.0
      %74 = vmatprep.subr.mxu0 0.0
      %75 = vmatpush1.msra.mxu0 0.0
      %76 = vmatprep.subr.mxu0 0.0
      %77 = vmatpush1.msra.mxu0 0.0
      %78 = vmatprep.subr.mxu0 0.0
      %79 = vmatpush1.msra.mxu0 0.0
      %80 = vmatprep.subr.mxu0 0.0
      %81 = vmatpush1.msra.mxu0 0.0
      %82 = vmatprep.subr.mxu0 0.0
      %83 = vmatpush1.msra.mxu0 0.0
      %84 = vmatprep.subr.mxu0 0.0
      %85 = vmatpush1.msra.mxu0 0.0
      %86 = vmatprep.subr.mxu0 0.0
      %87 = vmatpush1.msra.mxu0 0.0
      %88 = vmatprep.subr.mxu0 0.0
      %89 = vmatpush1.msra.mxu0 0.0
      %90 = vmatprep.subr.mxu0 0.0
      %91 = vmatpush1.msra.mxu0 0.0
      %92 = vmatprep.subr.mxu0 0.0
      %93 = vmatpush1.msra.mxu0 0.0
      %94 = vmatprep.subr.mxu0 0.0
      %95 = vmatpush1.msra.mxu0 0.0
      %96 = vmatprep.subr.mxu0 0.0
      %97 = vmatpush1.msra.mxu0 0.0
      %98 = vmatprep.subr.mxu0 0.0
      %99 = vmatpush1.msra.mxu0 0.0
      %100 = vmatprep.subr.mxu0 0.0
      %101 = vmatpush1.msra.mxu0 0.0
      %102 = vmatprep.subr.mxu0 0.0
      %103 = vmatpush1.msra.mxu0 0.0
      %104 = vmatprep.subr.mxu0 0.0
      %105 = vmatpush1.msra.mxu0 0.0
      %106 = vmatprep.subr.mxu0 0.0
      %107 = vmatpush1.msra.mxu0 0.0
      %108 = vmatprep.subr.mxu0 0.0
      %109 = vmatpush1.msra.mxu0 0.0
      %110 = vmatprep.subr.mxu0 0.0
      %111 = vmatpush1.msra.mxu0 0.0
      %112 = vmatprep.subr.mxu0 0.0
      %113 = vmatpush1.msra.mxu0 0.0
      %114 = vmatprep.subr.mxu0 0.0
      %115 = vmatpush1.msra.mxu0 0.0
      %116 = vmatprep.subr.mxu0 0.0
      %117 = vmatpush1.msra.mxu0 0.0
      %118 = vmatprep.subr.mxu0 0.0
      %119 = vmatpush1.msra.mxu0 0.0
      %120 = vmatprep.subr.mxu0 0.0
      %121 = vmatpush1.msra.mxu0 0.0
      %122 = vmatprep.subr.mxu0 0.0
      %123 = vmatpush1.msra.mxu0 0.0
      %124 = vmatprep.subr.mxu0 0.0
      %125 = vmatpush1.msra.mxu0 0.0
      %126 = vmatprep.subr.mxu0 0.0
      %127 = vmatpush1.msra.mxu0 0.0
      %128 = vmatprep.mubr.f32.mxu0 0.0
      %129 = vmatmul.mubr.f32.gmra.mrb[0].mxu0 %v62
      %v130 = vpop.f32.mrb[0].mxu0
      %v131 = vadd.f32 0.0, %v130
      %v132 = vpop.f32.mrb[0].mxu0
      %133 = vdwg.mxu0
      %134 = vst.msk [vmem:[#allocation3] sm:$0xff] %vm23, %v131
    $region17: #{tpu_custom_call.1} parent=1 // pred_fallthru
      _
    %v135 = vld [vmem:[%s2] sm:$0xf]
    %v136 = vld [vmem:[%s2 + $0x4] sm:$0xf]
    %v137 = vld [vmem:[%s1] sm:$0xf]
    %v138 = vld [vmem:[%s1 + $0x4] sm:$0xf]
    %v141 = vunpack.c.l.b16 %v135
    %v142 = vunpack.c.l.b16 %v136
    %v143 = vpack.c.b16 %v142, %v141
    %v146 = vunpack.c.l.b16 %v137
    %v147 = vunpack.c.l.b16 %v138
    %v148 = vpack.c.b16 %v147, %v146
    %vm150 = vcmask 130048
    %v152 = vsel %vm150, %v143, 0
    %154 = vmatprep.subr.bf16.mxu0 0
    %155 = vmatpush1.bf16.msra.mxu0 %v148
    %156 = vmatprep.subr.bf16.mxu0 0
    %157 = vmatpush1.bf16.msra.mxu0 0
    %158 = vmatprep.subr.bf16.mxu0 0
    %159 = vmatpush1.bf16.msra.mxu0 0
    %160 = vmatprep.subr.bf16.mxu0 0
    %161 = vmatpush1.bf16.msra.mxu0 0
    %162 = vmatprep.subr.bf16.mxu0 0
    %163 = vmatpush1.bf16.msra.mxu0 0
    %164 = vmatprep.subr.bf16.mxu0 0
    %165 = vmatpush1.bf16.msra.mxu0 0
    %166 = vmatprep.subr.bf16.mxu0 0
    %167 = vmatpush1.bf16.msra.mxu0 0
    %168 = vmatprep.subr.bf16.mxu0 0
    %169 = vmatpush1.bf16.msra.mxu0 0
    %170 = vmatprep.subr.bf16.mxu0 0
    %171 = vmatpush1.bf16.msra.mxu0 0
    %172 = vmatprep.subr.bf16.mxu0 0
    %173 = vmatpush1.bf16.msra.mxu0 0
    %174 = vmatprep.subr.bf16.mxu0 0
    %175 = vmatpush1.bf16.msra.mxu0 0
    %176 = vmatprep.subr.bf16.mxu0 0
    %177 = vmatpush1.bf16.msra.mxu0 0
    %178 = vmatprep.subr.bf16.mxu0 0
    %179 = vmatpush1.bf16.msra.mxu0 0
    %180 = vmatprep.subr.bf16.mxu0 0
    %181 = vmatpush1.bf16.msra.mxu0 0
    %182 = vmatprep.subr.bf16.mxu0 0
    %183 = vmatpush1.bf16.msra.mxu0 0
    %184 = vmatprep.subr.bf16.mxu0 0
    %185 = vmatpush1.bf16.msra.mxu0 0
    %186 = vmatprep.mubr.bf16.mxu0 0
    %187 = vmatmul.mubr.bf16.gmra.mrb[0].mxu0 %v152
    %v188 = vpop.f32.mrb[0].mxu0
    %v189 = vadd.f32 0.0, %v188
    %v190 = vpop.f32.mrb[0].mxu0
    %v191 = vpop.f32.mrb[0].mxu0
    %v192 = vadd.f32 0.0, %v191
    %v193 = vpop.f32.mrb[0].mxu0
    %194 = vdwg.mxu0
    %s195 = smul.u32 0, 16
    %s196 = scalar_lea.vmem %s0, %s195
    %v197 = vld [vmem:[%s196] sm:$0xff]
    %v198 = vld [vmem:[%s196 + $0x8] sm:$0xff]
    %v199 = vld [vmem:[#allocation2] sm:$0xff]
    %v200 = vld [vmem:[#allocation2 + $0x8] sm:$0xff]
    %v201 = vmul.f32 %v197, %v189
    %v202 = vmul.f32 %v198, %v192
    %v203 = vadd.f32 %v199, %v201
    %v204 = vadd.f32 %v200, %v202
    %vm205 = vcmask 64512
    %206 = vst.msk [vmem:[#allocation2] sm:$0xff] %vm205, %v203
    %207 = vst.msk [vmem:[#allocation2 + $0x8] sm:$0xff] %vm205, %v204
    // Predicated region
    $region18: #{tpu_custom_call.1} parent=1 // pred_check
      %p208 = pneg %p19
    $region19: #{tpu_custom_call.1} parent=1 // pred_check_branch
      %210 = sbr.rel (%p208) target = $region21
    $region20: #{tpu_custom_call.1} parent=1 // pred_region
      %v211 = vld [vmem:[#allocation2] sm:$0xff]
      %v212 = vld [vmem:[#allocation2 + $0x8] sm:$0xff]
      %v213 = vsel %vm205, %v211, 0.0
      %v214 = vsel %vm205, %v212, 0.0
      %v215 = vadd.f32 %v213, %v214
      %216 = vadd.xlane.f32.xlu0 %v215
      %v217 = vpop.xlane.xlu0 %216
      %v218 = vrot.slane %v217, 4
      %v219 = vadd.f32 %v217, %v218
      %v220 = vrot.slane %v219, 2
      %v221 = vadd.f32 %v219, %v220
      %v222 = vrot.slane %v221, 1
      %v223 = vadd.f32 %v221, %v222
      %s224 = vtos %v223
      %v225 = vstv %s224
      %vm226 = vcmask 0
      %227 = vst.msk [vmem:[#allocation5] sm:$0x1] %vm226, %v225
    $region21: #{tpu_custom_call.1} parent=1 // pred_fallthru
      _
    // Predicated region
    $region22: #{tpu_custom_call.1} parent=1 // pred_check
      _
    $region23: #{tpu_custom_call.1} parent=1 // pred_check_branch
      %229 = sbr.rel (0) target = $region25
    $region24: #{tpu_custom_call.1} parent=1 // pred_region
      %s231 = ssub.s32 128, 128
      %232 = vsyncadd [#allocation4], %s231
      %s234 = sshll.u32 [#allocation3], 4
      %s235 = int_to_ptr.vmem [resolvable:$true] %s234
      %237 = dma.vmem_to_hbm [thread:$0]  %s235, 128, %s3, [#allocation4]
    $region25: #{tpu_custom_call.1} parent=1 // pred_fallthru
      _
    // Predicated region
    $region26: #{tpu_custom_call.1} parent=1 // pred_check
      _
    $region27: #{tpu_custom_call.1} parent=1 // pred_check_branch
      %239 = sbr.rel (0) target = $region29
    $region28: #{tpu_custom_call.1} parent=1 // pred_region
      %s241 = ssub.s32 16, 16
      %242 = vsyncadd [#allocation6], %s241
      %s244 = sshll.u32 [#allocation5], 4
      %s245 = int_to_ptr.vmem [resolvable:$true] %s244
      %247 = dma.vmem_to_hbm [thread:$0]  %s245, 16, %s4, [#allocation6]
    $region29: #{tpu_custom_call.1} parent=1 // pred_fallthru
      _
    // Predicated region
    $region30: #{tpu_custom_call.1} parent=1 // pred_check
      _
    $region31: #{tpu_custom_call.1} parent=1 // pred_check_branch
      %249 = sbr.rel (0) target = $region33
    $region32: #{tpu_custom_call.1} parent=1 // pred_region
      %250 = dma.done [#allocation4], 128
    $region33: #{tpu_custom_call.1} parent=1 // pred_fallthru
      _
    // Predicated region
    $region34: #{tpu_custom_call.1} parent=1 // pred_check
      _
    $region35: #{tpu_custom_call.1} parent=1 // pred_check_branch
      %252 = sbr.rel (0) target = $region37
    $region36: #{tpu_custom_call.1} parent=1 // pred_region
      %253 = dma.done [#allocation6], 16
    $region37: #{tpu_custom_call.1} parent=1 // pred_fallthru
      _
    %254 = vsyncpa [#allocation4], 1
    %255 = vsyncpa [#allocation6], 1

</llo_original>
